<compile_context>
chip_gen: v7x
topology: tpu7x:2x2x1
jax: 0.10.0
libtpu: 0.0.40
codegen_flags: <defaults>
</compile_context>

<pallas_src>
import functools

import jax
import jax.numpy as jnp
import numpy as np
from jax import lax
from jax.experimental import pallas as pl
from jax.experimental.pallas import tpu as pltpu

_LANES = 128
_NEG_FILL = -1e30          # finite "minus infinity" for padded classes / rows


# --------------------------------------------------------------------------- #
# Kernel
# --------------------------------------------------------------------------- #
def _pce_kernel(logits_ref, target_ref, out_ref, m_acc, l_acc, p_acc, *, sub_class):
    """Grid = (L_tiles [parallel], world_size, class_tiles); last two reduce.

    logits_ref : (tile_l, tile_c)  one rank's logits tile (bf16 or f32)
    target_ref : (tile_l, 1)       int32 targets (padded-global class ids)
    out_ref    : (8, 128)          per-L-tile partial loss (broadcast scalar)
    m/l/p_acc  : (tile_l, 128) f32 per-lane running max / exp-sum / gathered logit
    """
    r = pl.program_id(1)                      # rank (class-shard) index
    c = pl.program_id(2)                      # class-tile index inside the shard
    n_r = pl.num_programs(1)
    n_c = pl.num_programs(2)

    tl, tc = logits_ref.shape
    k = tc // _LANES                          # 128-lane chunks per class tile
    rb = 32 if tl % 32 == 0 else (16 if tl % 16 == 0 else 8)
    n_rb = tl // rb                           # row blocks per L tile

    @pl.when(jnp.logical_and(r == 0, c == 0))
    def _init():
        m_acc[...] = jnp.full_like(m_acc, -jnp.inf)
        l_acc[...] = jnp.zeros_like(l_acc)
        p_acc[...] = jnp.zeros_like(p_acc)

    tile_class_start = r * sub_class + c * tc
    lane_ids = lax.broadcasted_iota(jnp.int32, (rb, _LANES), 1)     # hoisted once

    # Row-block loop keeps each accumulator's live range to <= 4 vregs (no spills)
    # while the class-chunk loops stream through the tile.
    @pl.loop(0, n_rb)
    def _row_block(b):
        row0 = pl.multiple_of(b * rb, rb)
        rows = pl.ds(row0, rb)

        # Target column relative to every lane of this tile — broadcast once per
        # row block; inside the chunk loop only a compare against a constant.
        rel = (jnp.broadcast_to(target_ref[rows, :] - tile_class_start,
                                (rb, _LANES)) - lane_ids)

        m_old = m_acc[rows, :]

        # ---- pass 1: per-lane running max in the native (bf16) dtype ----
        cmax = logits_ref[rows, pl.ds(0, _LANES)]
        for j in range(1, k):
            cmax = jnp.maximum(cmax, logits_ref[rows, pl.ds(j * _LANES, _LANES)])
        m_new = jnp.maximum(m_old, cmax.astype(jnp.float32))

        # Rescale previous accumulation once per tile; guard -inf - -inf = nan.
        delta = jnp.where(m_old == m_new, 0.0, m_old - m_new)
        l = l_acc[rows, :] * jnp.exp(delta)
        p = p_acc[rows, :]

        # ---- pass 2: per-lane exp sums + gathered target logit (lane-dense) ----
        for j in range(k):
            x = logits_ref[rows, pl.ds(j * _LANES, _LANES)].astype(jnp.float32)
            l = l + jnp.exp(x - m_new)
            p = p + jnp.where(rel == j * _LANES, x, 0.0)

        m_acc[rows, :] = m_new
        l_acc[rows, :] = l
        p_acc[rows, :] = p

    # ---- epilogue: single cross-lane (XLU) reduce per L-tile after the sweep ----
    @pl.when(jnp.logical_and(r == n_r - 1, c == n_c - 1))
    def _finalize():
        def fin(b, acc):
            rows = pl.ds(pl.multiple_of(b * rb, rb), rb)
            m = m_acc[rows, :]
            m_row = jnp.max(m, axis=-1, keepdims=True)                   # (rb, 1)
            sum_exp = jnp.sum(l_acc[rows, :] * jnp.exp(m - m_row),
                              axis=-1, keepdims=True)                    # (rb, 1)
            pred = jnp.sum(p_acc[rows, :], axis=-1, keepdims=True)       # (rb, 1)
            row_loss = (m_row + jnp.log(sum_exp)) - pred
            return acc + jnp.sum(row_loss)

        tile_loss = lax.fori_loop(0, n_rb, fin, jnp.float32(0.0))
        out_ref[...] = jnp.broadcast_to(jnp.reshape(tile_loss, (1, 1)), (8, _LANES))


# --------------------------------------------------------------------------- #
# Wrapper: padding, capacity-aware tiling, pallas_call
# --------------------------------------------------------------------------- #
def _vmem_capacity_bytes(default=64 * 1024 * 1024):
    try:
        cap = getattr(pltpu.get_tpu_info(), "vmem_capacity_bytes", None)
        if cap:
            return int(cap)
    except Exception:
        pass
    return default          # conservative (v7x per-TC) fallback


def _pick_tile(dim, cap, align):
    """Largest multiple of `align` dividing `dim`, <= min(cap, dim)."""
    best = align
    cap = min(cap, dim)
    d = align
    while d <= cap:
        if dim % d == 0:
            best = d
        d += align
    return best


def _buf_bytes(tile_l, tile_c, itemsize):
    return (2 * tile_l * tile_c * itemsize        # logits tile, double-buffered
            + 2 * tile_l * _LANES * 4             # target tile (lane-padded)
            + 3 * tile_l * _LANES * 4             # scratch accumulators
            + 2 * 8 * _LANES * 4)                 # output block


def _choose_tiles(l_pad, c_pad, itemsize, vmem_cap):
    budget = min(vmem_cap // 2, 48 * 1024 * 1024)
    # n_l >= 2 lets the runtime shard the parallel L axis across both v7x cores.
    tl_cap = 512 if l_pad < 16 else min(512, l_pad // 2)
    tile_l = _pick_tile(l_pad, max(8, tl_cap), 8)
    tile_c = c_pad                                  # full shard: contiguous row DMAs
    while _buf_bytes(tile_l, tile_c, itemsize) > budget:
        if tile_c > _LANES:
            tile_c = _pick_tile(c_pad, tile_c // 2, _LANES)
        elif tile_l > 8:
            tile_l = _pick_tile(l_pad, tile_l // 2, 8)
        else:
            break
    return tile_l, tile_c


def _pad_inputs(sharded_logits, target):
    """Pad class dim to a multiple of 128 and rows to a multiple of 8.

    Padded classes hold a large negative value (exp underflows to 0); padded rows
    hold a single 0 logit at padded-global class 0 and target 0, so their row
    loss is exactly 0.  Targets are remapped to the padded class numbering.
    """
    w, l, c_sub = sharded_logits.shape
    c_pad = ((c_sub + _LANES - 1) // _LANES) * _LANES
    l_pad = ((l + 7) // 8) * 8
    x = sharded_logits
    tgt = target.astype(jnp.int32)
    if c_pad != c_sub:
        x = jnp.pad(x, ((0, 0), (0, 0), (0, c_pad - c_sub)),
                    constant_values=_NEG_FILL)
        tgt = (tgt // c_sub) * c_pad + (tgt % c_sub)
    if l_pad != l:
        pad_rows = jnp.full((w, l_pad - l, c_pad), _NEG_FILL, dtype=x.dtype)
        pad_rows = pad_rows.at[0, :, 0].set(0.0)
        x = jnp.concatenate([x, pad_rows], axis=1)
        tgt = jnp.concatenate([tgt, jnp.zeros((l_pad - l,), jnp.int32)])
    return x, tgt, c_pad, l_pad


def parallel_cross_entropy_loss(sharded_logits, target, *, tile_l=None, tile_c=None,
                                vmem_limit_bytes=None):
    """sharded_logits: (world_size, L, sub_class) bf16/f32, rank r owns classes
    [r*sub_class, (r+1)*sub_class); target: (L,) int.  Returns the scalar loss the
    torch module produces after both all_reduces (single-device emulation)."""
    w, l, _ = sharded_logits.shape

    x, tgt, c_pad, l_pad = _pad_inputs(sharded_logits, target)
    itemsize = jnp.dtype(x.dtype).itemsize
    vmem_cap = _vmem_capacity_bytes()

    auto_tl, auto_tc = _choose_tiles(l_pad, c_pad, itemsize, vmem_cap)
    tile_l = auto_tl if tile_l is None else tile_l
    tile_c = auto_tc if tile_c is None else tile_c
    assert l_pad % tile_l == 0 and tile_l % 8 == 0
    assert c_pad % tile_c == 0 and tile_c % _LANES == 0
    n_l = l_pad // tile_l
    n_c = c_pad // tile_c

    if vmem_limit_bytes is None:
        vmem_limit_bytes = int(min(vmem_cap - (16 << 20),
                                   max(32 << 20,
                                       _buf_bytes(tile_l, tile_c, itemsize) + (8 << 20))))

    kernel = functools.partial(_pce_kernel, sub_class=c_pad)

    out = pl.pallas_call(
        kernel,
        out_shape=jax.ShapeDtypeStruct((n_l, 8, _LANES), jnp.float32),
        grid_spec=pltpu.PrefetchScalarGridSpec(
            num_scalar_prefetch=0,
            grid=(n_l, w, n_c),             # L tiles lead (parallel); reductions last
            in_specs=[
                pl.BlockSpec((None, tile_l, tile_c), lambda i, r, c: (r, i, c)),
                pl.BlockSpec((tile_l, 1), lambda i, r, c: (i, 0)),
            ],
            out_specs=pl.BlockSpec((None, 8, _LANES), lambda i, r, c: (i, 0, 0)),
            scratch_shapes=[
                pltpu.VMEM((tile_l, _LANES), jnp.float32),   # running per-lane max
                pltpu.VMEM((tile_l, _LANES), jnp.float32),   # per-lane sum exp(x - m)
                pltpu.VMEM((tile_l, _LANES), jnp.float32),   # per-lane gathered logit
            ],
        ),
        compiler_params=pltpu.CompilerParams(
            dimension_semantics=("parallel", "arbitrary", "arbitrary"),
            vmem_limit_bytes=vmem_limit_bytes,
        ),
    )(x, tgt.reshape(l_pad, 1))

    # Tiny final reduction over L tiles in plain JAX; divide by the ORIGINAL length.
    return jnp.sum(out[:, 0, 0]) / l


# --------------------------------------------------------------------------- #
# Self-test
# --------------------------------------------------------------------------- #
if __name__ == "__main__":
    key = jax.random.PRNGKey(0)
    k1, k2, k3, k4 = jax.random.split(key, 4)

    def reference(full_f32, target, length):
        lse = jax.nn.logsumexp(full_f32, axis=-1)
        pred = full_f32[jnp.arange(full_f32.shape[0]), target]
        return jnp.sum(lse - pred) / length

    # --- test 1: bf16 logits, 128-aligned shards, large dynamic range ---
    world_size, num_class, L = 4, 2048, 256
    sub_class = num_class // world_size
    full = (40.0 * jax.random.normal(k1, (L, num_class), jnp.float32)).astype(jnp.bfloat16)
    target = jax.random.randint(k2, (L,), 0, num_class, dtype=jnp.int32)
    sharded = full.reshape(L, world_size, sub_class).transpose(1, 0, 2)

    loss_auto = jax.block_until_ready(parallel_cross_entropy_loss(sharded, target))
    loss_tiled = jax.block_until_ready(
        parallel_cross_entropy_loss(sharded, target, tile_l=64, tile_c=256))
    ref1 = reference(full.astype(jnp.float32), target, L)
    np.testing.assert_allclose(np.asarray(loss_auto), np.asarray(ref1), rtol=1e-4, atol=1e-4)
    np.testing.assert_allclose(np.asarray(loss_tiled), np.asarray(ref1), rtol=1e-4, atol=1e-4)

    # --- test 2: f32 logits, non-128-aligned shard (200 -> 256) and ragged L ---
    world_size, num_class, L = 2, 400, 52
    sub_class = num_class // world_size
    full2 = 5.0 * jax.random.normal(k3, (L, num_class), jnp.float32)
    target2 = jax.random.randint(k4, (L,), 0, num_class, dtype=jnp.int32)
    sharded2 = full2.reshape(L, world_size, sub_class).transpose(1, 0, 2)

    loss2 = jax.block_until_ready(parallel_cross_entropy_loss(sharded2, target2))
    ref2 = reference(full2, target2, L)
    np.testing.assert_allclose(np.asarray(loss2), np.asarray(ref2), rtol=1e-4, atol=1e-4)

    print("KERNEL_OK")
</pallas_src>

<mosaic_0001>
module attributes {stable_mosaic.version = 11 : i64} {
  func.func @_pce_kernel(%arg0: i32, %arg1: i32, %arg2: i32, %arg3: memref<1x128x512xbf16, #tpu.memory_space<vmem>>, %arg4: memref<128x1xi32, #tpu.memory_space<vmem>>, %arg5: memref<1x8x128xf32, #tpu.memory_space<vmem>>, %arg6: memref<128x128xf32, #tpu.memory_space<vmem>>, %arg7: memref<128x128xf32, #tpu.memory_space<vmem>>, %arg8: memref<128x128xf32, #tpu.memory_space<vmem>>) attributes {dimension_semantics = [#tpu.dimension_semantics<parallel>, #tpu.dimension_semantics<arbitrary>, #tpu.dimension_semantics<arbitrary>], iteration_bounds = array<i64: 2, 4, 1>, scalar_prefetch = 0 : i64, scratch_operands = 3 : i64, tpu.core_type = #tpu.core_type<tc>, window_params = [{transform_indices = @transform_0, window_bounds = array<i64: 1, 128, 512>}, {transform_indices = @transform_1, window_bounds = array<i64: 128, 1>}, {transform_indices = @transform_2, window_bounds = array<i64: 1, 8, 128>}]} {
    %c0_i32 = arith.constant 0 : i32
    %0 = arith.cmpi eq, %arg1, %c0_i32 : i32
    %c0_i32_0 = arith.constant 0 : i32
    %1 = arith.cmpi eq, %arg2, %c0_i32_0 : i32
    %2 = arith.andi %0, %1 : i1
    %3 = arith.extui %2 : i1 to i32
    %c0_i32_1 = arith.constant 0 : i32
    %4 = arith.cmpi ne, %3, %c0_i32_1 : i32
    scf.if %4 {
      %cst = arith.constant 0xFF800000 : f32
      %15 = vector.broadcast %cst : f32 to vector<128x128xf32>
      %c0 = arith.constant 0 : index
      %c0_7 = arith.constant 0 : index
      %16 = vector.load %arg6[%c0, %c0_7] : memref<128x128xf32, #tpu.memory_space<vmem>>, vector<128x128xf32>
      tpu.vector_store %arg6[%c0, %c0_7], %15 {strides = array<i32>} : memref<128x128xf32, #tpu.memory_space<vmem>>, vector<128x128xf32>,
      %cst_8 = arith.constant 0.000000e+00 : f32
      %17 = vector.broadcast %cst_8 : f32 to vector<128x128xf32>
      %c0_9 = arith.constant 0 : index
      %c0_10 = arith.constant 0 : index
      %18 = vector.load %arg7[%c0_9, %c0_10] : memref<128x128xf32, #tpu.memory_space<vmem>>, vector<128x128xf32>
      tpu.vector_store %arg7[%c0_9, %c0_10], %17 {strides = array<i32>} : memref<128x128xf32, #tpu.memory_space<vmem>>, vector<128x128xf32>,
      %cst_11 = arith.constant 0.000000e+00 : f32
      %19 = vector.broadcast %cst_11 : f32 to vector<128x128xf32>
      %c0_12 = arith.constant 0 : index
      %c0_13 = arith.constant 0 : index
      %20 = vector.load %arg8[%c0_12, %c0_13] : memref<128x128xf32, #tpu.memory_space<vmem>>, vector<128x128xf32>
      tpu.vector_store %arg8[%c0_12, %c0_13], %19 {strides = array<i32>} : memref<128x128xf32, #tpu.memory_space<vmem>>, vector<128x128xf32>,
    } else {
    }
    %c512_i32 = arith.constant 512 : i32
    %5 = arith.muli %arg1, %c512_i32 : i32
    %c512_i32_2 = arith.constant 512 : i32
    %6 = arith.muli %arg2, %c512_i32_2 : i32
    %7 = arith.addi %5, %6 : i32
    %8 = tpu.iota {dimensions = array<i32: 1>} : vector<32x128xi32>
    %c0_i32_3 = arith.constant 0 : i32
    %c4_i32 = arith.constant 4 : i32
    %9 = arith.addi %c0_i32_3, %c4_i32 : i32
    %c1_i32 = arith.constant 1 : i32
    scf.for %arg9 = %c0_i32_3 to %9 step %c1_i32  : i32 {
      %c1_i32_7 = arith.constant 1 : i32
      %15 = arith.muli %arg9, %c1_i32_7 : i32
      %c0_i32_8 = arith.constant 0 : i32
      %16 = arith.addi %c0_i32_8, %15 : i32
      %c32_i32 = arith.constant 32 : i32
      %17 = arith.muli %16, %c32_i32 : i32
      %18 = tpu.assume_multiple %17, 32 : i32
      %19 = arith.index_cast %18 : i32 to index
      %c0 = arith.constant 0 : index
      %20 = vector.load %arg4[%19, %c0] : memref<128x1xi32, #tpu.memory_space<vmem>>, vector<32x1xi32>
      %21 = vector.broadcast %7 : i32 to vector<32x1xi32>
      %22 = arith.subi %20, %21 : vector<32x1xi32>
      %23 = vector.shape_cast %22 : vector<32x1xi32> to vector<32x1xi32>
      %24 = vector.broadcast %23 : vector<32x1xi32> to vector<32x128xi32>
      %25 = arith.subi %24, %8 : vector<32x128xi32>
      %26 = arith.index_cast %18 : i32 to index
      %c0_9 = arith.constant 0 : index
      %27 = vector.load %arg6[%26, %c0_9] : memref<128x128xf32, #tpu.memory_space<vmem>>, vector<32x128xf32>
      %c0_10 = arith.constant 0 : index
      %28 = arith.index_cast %18 : i32 to index
      %c0_11 = arith.constant 0 : index
      %29 = vector.load %arg3[%c0_10, %28, %c0_11] : memref<1x128x512xbf16, #tpu.memory_space<vmem>>, vector<1x32x128xbf16>
      %30 = vector.shape_cast %29 : vector<1x32x128xbf16> to vector<32x128xbf16>
      %c0_12 = arith.constant 0 : index
      %31 = arith.index_cast %18 : i32 to index
      %c128 = arith.constant 128 : index
      %32 = vector.load %arg3[%c0_12, %31, %c128] : memref<1x128x512xbf16, #tpu.memory_space<vmem>>, vector<1x32x128xbf16>
      %33 = vector.shape_cast %32 : vector<1x32x128xbf16> to vector<32x128xbf16>
      %34 = arith.maximumf %30, %33 : vector<32x128xbf16>
      %c0_13 = arith.constant 0 : index
      %35 = arith.index_cast %18 : i32 to index
      %c256 = arith.constant 256 : index
      %36 = vector.load %arg3[%c0_13, %35, %c256] : memref<1x128x512xbf16, #tpu.memory_space<vmem>>, vector<1x32x128xbf16>
      %37 = vector.shape_cast %36 : vector<1x32x128xbf16> to vector<32x128xbf16>
      %38 = arith.maximumf %34, %37 : vector<32x128xbf16>
      %c0_14 = arith.constant 0 : index
      %39 = arith.index_cast %18 : i32 to index
      %c384 = arith.constant 384 : index
      %40 = vector.load %arg3[%c0_14, %39, %c384] : memref<1x128x512xbf16, #tpu.memory_space<vmem>>, vector<1x32x128xbf16>
      %41 = vector.shape_cast %40 : vector<1x32x128xbf16> to vector<32x128xbf16>
      %42 = arith.maximumf %38, %41 : vector<32x128xbf16>
      %43 = arith.extf %42 : vector<32x128xbf16> to vector<32x128xf32>
      %44 = arith.maximumf %27, %43 : vector<32x128xf32>
      %45 = arith.cmpf oeq, %27, %44 : vector<32x128xf32>
      %46 = arith.subf %27, %44 : vector<32x128xf32>
      %cst = arith.constant 0.000000e+00 : f32
      %47 = vector.broadcast %cst : f32 to vector<32x128xf32>
      %48 = arith.select %45, %47, %46 : vector<32x128xi1>, vector<32x128xf32>
      %49 = arith.index_cast %18 : i32 to index
      %c0_15 = arith.constant 0 : index
      %50 = vector.load %arg7[%49, %c0_15] : memref<128x128xf32, #tpu.memory_space<vmem>>, vector<32x128xf32>
      %51 = math.exp %48 : vector<32x128xf32>
      %52 = arith.mulf %50, %51 : vector<32x128xf32>
      %53 = arith.index_cast %18 : i32 to index
      %c0_16 = arith.constant 0 : index
      %54 = vector.load %arg8[%53, %c0_16] : memref<128x128xf32, #tpu.memory_space<vmem>>, vector<32x128xf32>
      %c0_17 = arith.constant 0 : index
      %55 = arith.index_cast %18 : i32 to index
      %c0_18 = arith.constant 0 : index
      %56 = vector.load %arg3[%c0_17, %55, %c0_18] : memref<1x128x512xbf16, #tpu.memory_space<vmem>>, vector<1x32x128xbf16>
      %57 = vector.shape_cast %56 : vector<1x32x128xbf16> to vector<32x128xbf16>
      %58 = arith.extf %57 : vector<32x128xbf16> to vector<32x128xf32>
      %59 = arith.subf %58, %44 : vector<32x128xf32>
      %60 = math.exp %59 : vector<32x128xf32>
      %61 = arith.addf %52, %60 : vector<32x128xf32>
      %c0_i32_19 = arith.constant 0 : i32
      %62 = vector.broadcast %c0_i32_19 : i32 to vector<32x128xi32>
      %63 = arith.cmpi eq, %25, %62 : vector<32x128xi32>
      %cst_20 = arith.constant 0.000000e+00 : f32
      %64 = vector.broadcast %cst_20 : f32 to vector<32x128xf32>
      %65 = arith.select %63, %58, %64 : vector<32x128xi1>, vector<32x128xf32>
      %66 = arith.addf %54, %65 : vector<32x128xf32>
      %c0_21 = arith.constant 0 : index
      %67 = arith.index_cast %18 : i32 to index
      %c128_22 = arith.constant 128 : index
      %68 = vector.load %arg3[%c0_21, %67, %c128_22] : memref<1x128x512xbf16, #tpu.memory_space<vmem>>, vector<1x32x128xbf16>
      %69 = vector.shape_cast %68 : vector<1x32x128xbf16> to vector<32x128xbf16>
      %70 = arith.extf %69 : vector<32x128xbf16> to vector<32x128xf32>
      %71 = arith.subf %70, %44 : vector<32x128xf32>
      %72 = math.exp %71 : vector<32x128xf32>
      %73 = arith.addf %61, %72 : vector<32x128xf32>
      %c128_i32 = arith.constant 128 : i32
      %74 = vector.broadcast %c128_i32 : i32 to vector<32x128xi32>
      %75 = arith.cmpi eq, %25, %74 : vector<32x128xi32>
      %cst_23 = arith.constant 0.000000e+00 : f32
      %76 = vector.broadcast %cst_23 : f32 to vector<32x128xf32>
      %77 = arith.select %75, %70, %76 : vector<32x128xi1>, vector<32x128xf32>
      %78 = arith.addf %66, %77 : vector<32x128xf32>
      %c0_24 = arith.constant 0 : index
      %79 = arith.index_cast %18 : i32 to index
      %c256_25 = arith.constant 256 : index
      %80 = vector.load %arg3[%c0_24, %79, %c256_25] : memref<1x128x512xbf16, #tpu.memory_space<vmem>>, vector<1x32x128xbf16>
      %81 = vector.shape_cast %80 : vector<1x32x128xbf16> to vector<32x128xbf16>
      %82 = arith.extf %81 : vector<32x128xbf16> to vector<32x128xf32>
      %83 = arith.subf %82, %44 : vector<32x128xf32>
      %84 = math.exp %83 : vector<32x128xf32>
      %85 = arith.addf %73, %84 : vector<32x128xf32>
      %c256_i32 = arith.constant 256 : i32
      %86 = vector.broadcast %c256_i32 : i32 to vector<32x128xi32>
      %87 = arith.cmpi eq, %25, %86 : vector<32x128xi32>
      %cst_26 = arith.constant 0.000000e+00 : f32
      %88 = vector.broadcast %cst_26 : f32 to vector<32x128xf32>
      %89 = arith.select %87, %82, %88 : vector<32x128xi1>, vector<32x128xf32>
      %90 = arith.addf %78, %89 : vector<32x128xf32>
      %c0_27 = arith.constant 0 : index
      %91 = arith.index_cast %18 : i32 to index
      %c384_28 = arith.constant 384 : index
      %92 = vector.load %arg3[%c0_27, %91, %c384_28] : memref<1x128x512xbf16, #tpu.memory_space<vmem>>, vector<1x32x128xbf16>
      %93 = vector.shape_cast %92 : vector<1x32x128xbf16> to vector<32x128xbf16>
      %94 = arith.extf %93 : vector<32x128xbf16> to vector<32x128xf32>
      %95 = arith.subf %94, %44 : vector<32x128xf32>
      %96 = math.exp %95 : vector<32x128xf32>
      %97 = arith.addf %85, %96 : vector<32x128xf32>
      %c384_i32 = arith.constant 384 : i32
      %98 = vector.broadcast %c384_i32 : i32 to vector<32x128xi32>
      %99 = arith.cmpi eq, %25, %98 : vector<32x128xi32>
      %cst_29 = arith.constant 0.000000e+00 : f32
      %100 = vector.broadcast %cst_29 : f32 to vector<32x128xf32>
      %101 = arith.select %99, %94, %100 : vector<32x128xi1>, vector<32x128xf32>
      %102 = arith.addf %90, %101 : vector<32x128xf32>
      %103 = arith.index_cast %18 : i32 to index
      %c0_30 = arith.constant 0 : index
      %104 = vector.load %arg6[%103, %c0_30] : memref<128x128xf32, #tpu.memory_space<vmem>>, vector<32x128xf32>
      tpu.vector_store %arg6[%103, %c0_30], %44 {strides = array<i32>} : memref<128x128xf32, #tpu.memory_space<vmem>>, vector<32x128xf32>,
      %105 = arith.index_cast %18 : i32 to index
      %c0_31 = arith.constant 0 : index
      %106 = vector.load %arg7[%105, %c0_31] : memref<128x128xf32, #tpu.memory_space<vmem>>, vector<32x128xf32>
      tpu.vector_store %arg7[%105, %c0_31], %97 {strides = array<i32>} : memref<128x128xf32, #tpu.memory_space<vmem>>, vector<32x128xf32>,
      %107 = arith.index_cast %18 : i32 to index
      %c0_32 = arith.constant 0 : index
      %108 = vector.load %arg8[%107, %c0_32] : memref<128x128xf32, #tpu.memory_space<vmem>>, vector<32x128xf32>
      tpu.vector_store %arg8[%107, %c0_32], %102 {strides = array<i32>} : memref<128x128xf32, #tpu.memory_space<vmem>>, vector<32x128xf32>,
    }
    %c4_i32_4 = arith.constant 4 : i32
    %c3_i32 = arith.constant 3 : i32
    %10 = arith.cmpi eq, %arg1, %c3_i32 : i32
    %c0_i32_5 = arith.constant 0 : i32
    %11 = arith.cmpi eq, %arg2, %c0_i32_5 : i32
    %12 = arith.andi %10, %11 : i1
    %13 = arith.extui %12 : i1 to i32
    %c0_i32_6 = arith.constant 0 : i32
    %14 = arith.cmpi ne, %13, %c0_i32_6 : i32
    scf.if %14 {
      %cst = arith.constant 0.000000e+00 : f32
      %c0_i32_7 = arith.constant 0 : i32
      %c4_i32_8 = arith.constant 4 : i32
      %15 = arith.addi %c0_i32_7, %c4_i32_8 : i32
      %c1_i32_9 = arith.constant 1 : i32
      %16 = scf.for %arg9 = %c0_i32_7 to %15 step %c1_i32_9 iter_args(%arg10 = %cst) -> (f32)  : i32 {
        %c32_i32 = arith.constant 32 : i32
        %23 = arith.muli %arg9, %c32_i32 : i32
        %24 = tpu.assume_multiple %23, 32 : i32
        %25 = arith.index_cast %24 : i32 to index
        %c0_13 = arith.constant 0 : index
        %26 = vector.load %arg6[%25, %c0_13] : memref<128x128xf32, #tpu.memory_space<vmem>>, vector<32x128xf32>
        %cst_14 = arith.constant dense<0xFF800000> : vector<32xf32>
        %27 = vector.multi_reduction <maximumf>, %26, %cst_14 [1] : vector<32x128xf32> to vector<32xf32>
        %28 = vector.shape_cast %27 : vector<32xf32> to vector<32x1xf32>
        %29 = arith.index_cast %24 : i32 to index
        %c0_15 = arith.constant 0 : index
        %30 = vector.load %arg7[%29, %c0_15] : memref<128x128xf32, #tpu.memory_space<vmem>>, vector<32x128xf32>
        %31 = vector.broadcast %28 : vector<32x1xf32> to vector<32x128xf32>
        %32 = arith.subf %26, %31 : vector<32x128xf32>
        %33 = math.exp %32 : vector<32x128xf32>
        %34 = arith.mulf %30, %33 : vector<32x128xf32>
        %cst_16 = arith.constant dense<0.000000e+00> : vector<32xf32>
        %35 = vector.multi_reduction <add>, %34, %cst_16 [1] : vector<32x128xf32> to vector<32xf32>
        %36 = vector.shape_cast %35 : vector<32xf32> to vector<32x1xf32>
        %37 = arith.index_cast %24 : i32 to index
        %c0_17 = arith.constant 0 : index
        %38 = vector.load %arg8[%37, %c0_17] : memref<128x128xf32, #tpu.memory_space<vmem>>, vector<32x128xf32>
        %cst_18 = arith.constant dense<0.000000e+00> : vector<32xf32>
        %39 = vector.multi_reduction <add>, %38, %cst_18 [1] : vector<32x128xf32> to vector<32xf32>
        %40 = vector.shape_cast %39 : vector<32xf32> to vector<32x1xf32>
        %41 = math.log %36 : vector<32x1xf32>
        %42 = arith.addf %28, %41 : vector<32x1xf32>
        %43 = arith.subf %42, %40 : vector<32x1xf32>
        %44 = vector.shape_cast %43 : vector<32x1xf32> to vector<1x32x1xf32>
        %cst_19 = arith.constant dense<0.000000e+00> : vector<1xf32>
        %45 = vector.multi_reduction <add>, %44, %cst_19 [1, 2] : vector<1x32x1xf32> to vector<1xf32>
        %46 = vector.shape_cast %45 : vector<1xf32> to vector<1x1x1xf32>
        %47 = vector.extract %46[0, 0, 0] : f32 from vector<1x1x1xf32>
        %48 = arith.addf %arg10, %47 : f32
        scf.yield %48 : f32
      }
      %c4_i32_10 = arith.constant 4 : i32
      %17 = vector.broadcast %16 : f32 to vector<1x1xf32>
      %18 = vector.shape_cast %17 : vector<1x1xf32> to vector<1x1xf32>
      %19 = vector.broadcast %18 : vector<1x1xf32> to vector<8x128xf32>
      %c0 = arith.constant 0 : index
      %c0_11 = arith.constant 0 : index
      %c0_12 = arith.constant 0 : index
      %20 = vector.load %arg5[%c0, %c0_11, %c0_12] : memref<1x8x128xf32, #tpu.memory_space<vmem>>, vector<1x8x128xf32>
      %21 = vector.shape_cast %20 : vector<1x8x128xf32> to vector<8x128xf32>
      %22 = vector.shape_cast %19 : vector<8x128xf32> to vector<1x8x128xf32>
      tpu.vector_store %arg5[%c0, %c0_11, %c0_12], %22 {strides = array<i32>} : memref<1x8x128xf32, #tpu.memory_space<vmem>>, vector<1x8x128xf32>,
    } else {
    }
    return
  }
  func.func @transform_0(%arg0: i32, %arg1: i32, %arg2: i32) -> (i32, i32, i32) {
    %c0_i32 = arith.constant 0 : i32
    return %arg1, %arg0, %arg2 : i32, i32, i32
  }
  func.func @transform_1(%arg0: i32, %arg1: i32, %arg2: i32) -> (i32, i32) {
    %c0_i32 = arith.constant 0 : i32
    %c0_i32_0 = arith.constant 0 : i32
    return %arg0, %c0_i32 : i32, i32
  }
  func.func @transform_2(%arg0: i32, %arg1: i32, %arg2: i32) -> (i32, i32, i32) {
    %c0_i32 = arith.constant 0 : i32
    %c0_i32_0 = arith.constant 0 : i32
    %c0_i32_1 = arith.constant 0 : i32
    return %arg0, %c0_i32, %c0_i32_0 : i32, i32, i32
  }
}

</mosaic_0001>

<llo_original>
// kernel: tpu_custom_call.1
$region0: #{tpu_custom_call.1}
  #allocation0 [shape = 'u32[]', space=smem, size = 0x4, offset = 0x4, fixed_abs, tag = 'smem constant byte address 0x4 - core index']
  #allocation1 [shape = 'u32[144,128]{1,0:T(1,128)}', space=vmem, size = 0x12000, scoped, tag = 'internal scratch']
  #allocation2 [shape = 'f32[128,128]{1,0:T(8,128)}', space=vmem, size = 0x10000, scoped, tag = 'scratch operand']
  #allocation3 [shape = 'f32[128,128]{1,0:T(8,128)}', space=vmem, size = 0x10000, scoped, tag = 'scratch operand']
  #allocation4 [shape = 'f32[128,128]{1,0:T(8,128)}', space=vmem, size = 0x10000, scoped, tag = 'scratch operand']
  %s0 = inlined_call_operand.hbm [shape: bf16[4,256,512], index: 0, kind: input, shape index: {}]
  %s1 = inlined_call_operand.vmem [shape: s32[256,1], index: 1, kind: input, shape index: {}]
  %s2 = inlined_call_operand.hbm [shape: f32[2,8,128], index: 2, kind: output, shape index: {}]
  %s3 = sld [smem:[#allocation0]]
  $region67: #{tpu_custom_call.1} parent=0
    _
  %s5 = ssub.s32 1, %s3
  %s6 = scalar_select 0, %s5, %s3
  $region1: #{tpu_custom_call.1} parent=0
    #allocation5 [shape = 'u8[262144]{0}', space=vmem, size = 0x40000, scoped, tag = 'input window, operand 0']
    #allocation6 [shape = 's32[2]{0}', space=sflag, size = 0x8, scoped, tag = 'scoped memory for tpu_custom_call.1']
    #allocation7 [shape = 's32[2]{0}', space=sflag, size = 0x8, scoped, tag = 'scoped memory for tpu_custom_call.1']
    #allocation8 [shape = 'u8[8192]{0}', space=vmem, size = 0x2000, scoped, tag = 'output window, operand 0']
    %7 = vsyncpa [#allocation6], 0
    %s8 = scalar_lea.sflag [#allocation6], 1
    %9 = vsyncpa %s8, 0
    %10 = vsyncpa [#allocation7], 0
    %s11 = scalar_lea.sflag [#allocation7], 1
    %12 = vsyncpa %s11, 0
    loop: start=0, step=1, limit=10
    $region2: #{tpu_custom_call.1} parent=1 // loop_pre_header
      _
    $region3: #{tpu_custom_call.1} parent=1 // loop_header
      %s14 = sphi 0, %s18
      %p15 = scmp.ge.s32.totalorder %s14, 10
      %s21 = sphi 0, %s40
      %s22 = sphi 0, %s36
      %s23 = sphi 0, %s32
      %s24 = sphi 0, %s21
      %s25 = sphi 0, %s22
      %s26 = sphi 0, %s23
      %s27 = sphi 0, %s24
      %s28 = sphi 0, %s25
      %s29 = sphi 0, %s26
      %s47 = sphi 0, %s49
      %s50 = sphi 0, %s47
      %s51 = sphi 0, %s50
      %s67 = sphi 0, %s51
      %s73 = sphi 0, %s75
      %s76 = sphi 0, %s73
      %s77 = sphi 0, %s76
      %s93 = sphi 0, %s77
      %s99 = sphi 0, %s101
      %s102 = sphi 0, %s99
      %s103 = sphi 0, %s102
      %s119 = sphi 0, %s103
    $region4: #{tpu_custom_call.1} parent=1 // loop_header_branch
      %17 = sbr.rel (%p15) target = $region8
    $region5: #{tpu_custom_call.1} parent=1 // loop_body
      %s19 = ssub.s32 %s14, 1
      %s20 = ssub.s32 %s14, 2
      %s30 = sadd.s32 1, %s23
      %p31 = scmp.ge.s32.totalorder %s30, 1
      %s32 = scalar_select %p31, 0, %s30
      %s33 = sadd.s32 1, %s22
      %s34 = scalar_select %p31, %s33, %s22
      %p35 = scmp.ge.s32.totalorder %s34, 4
      %s36 = scalar_select %p35, 0, %s34
      %s37 = sadd.s32 1, %s21
      %s38 = scalar_select %p35, %s37, %s21
      %p39 = scmp.ge.s32.totalorder %s38, 2
      %s40 = scalar_select %p39, 0, %s38
      %s41 = ssub.s32 %s22, %s36
      %s42 = ssub.s32 %s21, %s40
      %s43 = sor.u32 %s41, %s42
      %s44 = ssub.s32 %s23, %s32
      %s45 = sor.u32 %s43, %s44
      %p46 = scmp.eq.s32.totalorder %s45, 0
      %s48 = sadd.s32 %s47, 1
      %s49 = scalar_select %p46, %s47, %s48
      %p52 = pneg %p46
      %p53 = scmp.eq.s32.totalorder %s14, 7
      %p54 = por %p52, %p53
      %p55 = scmp.ne.s32.totalorder %s47, %s50
      %p56 = scmp.eq.s32.totalorder %s14, 0
      %p57 = por %p55, %p56
      %p58 = scmp.ne.s32.totalorder %s47, %s50
      %p59 = scmp.eq.s32.totalorder %s19, 7
      %p60 = por %p58, %p59
      %p61 = scmp.ne.s32.totalorder %s50, %s51
      %p62 = scmp.eq.s32.totalorder %s19, 0
      %p63 = por %p61, %p62
      %p64 = scmp.ne.s32.totalorder %s50, %s51
      %p65 = scmp.eq.s32.totalorder %s20, 7
      %p66 = por %p64, %p65
      %p68 = scmp.ne.s32.totalorder %s51, %s67
      %p69 = scmp.eq.s32.totalorder %s20, 0
      %p70 = por %p68, %p69
      %s71 = ssub.s32 %s21, %s40
      %p72 = scmp.eq.s32.totalorder %s71, 0
      %s74 = sadd.s32 %s73, 1
      %s75 = scalar_select %p72, %s73, %s74
      %p78 = pneg %p72
      %p79 = scmp.eq.s32.totalorder %s14, 7
      %p80 = por %p78, %p79
      %p81 = scmp.ne.s32.totalorder %s73, %s76
      %p82 = scmp.eq.s32.totalorder %s14, 0
      %p83 = por %p81, %p82
      %p84 = scmp.ne.s32.totalorder %s73, %s76
      %p85 = scmp.eq.s32.totalorder %s19, 7
      %p86 = por %p84, %p85
      %p87 = scmp.ne.s32.totalorder %s76, %s77
      %p88 = scmp.eq.s32.totalorder %s19, 0
      %p89 = por %p87, %p88
      %p90 = scmp.ne.s32.totalorder %s76, %s77
      %p91 = scmp.eq.s32.totalorder %s20, 7
      %p92 = por %p90, %p91
      %p94 = scmp.ne.s32.totalorder %s77, %s93
      %p95 = scmp.eq.s32.totalorder %s20, 0
      %p96 = por %p94, %p95
      %s97 = ssub.s32 %s21, %s40
      %p98 = scmp.eq.s32.totalorder %s97, 0
      %s100 = sadd.s32 %s99, 1
      %s101 = scalar_select %p98, %s99, %s100
      %p104 = pneg %p98
      %p105 = scmp.eq.s32.totalorder %s14, 7
      %p106 = por %p104, %p105
      %p107 = scmp.ne.s32.totalorder %s99, %s102
      %p108 = scmp.eq.s32.totalorder %s14, 0
      %p109 = por %p107, %p108
      %p110 = scmp.ne.s32.totalorder %s99, %s102
      %p111 = scmp.eq.s32.totalorder %s19, 7
      %p112 = por %p110, %p111
      %p113 = scmp.ne.s32.totalorder %s102, %s103
      %p114 = scmp.eq.s32.totalorder %s19, 0
      %p115 = por %p113, %p114
      %p116 = scmp.ne.s32.totalorder %s102, %s103
      %p117 = scmp.eq.s32.totalorder %s20, 7
      %p118 = por %p116, %p117
      %p120 = scmp.ne.s32.totalorder %s103, %s119
      %p121 = scmp.eq.s32.totalorder %s20, 0
      %p122 = por %p120, %p121
      %p123 = scmp.le.s32.totalorder 1, %s14
      %p124 = scmp.lt.s32.totalorder %s14, 9
      %p125 = pnand %p123, %p124
      %p126 = pneg %p125
      // Predicated region
      $region9: #{tpu_custom_call.1} parent=5 // pred_check
        _
      $region10: #{tpu_custom_call.1} parent=5 // pred_check_branch
        %128 = sbr.rel (%p125) target = $region12
      $region11: #{tpu_custom_call.1} parent=5 // pred_region
        %s129 = ssub.s32 %s14, 1
      $region12: #{tpu_custom_call.1} parent=5 // pred_fallthru
        _
      %p130 = scmp.lt.s32.totalorder %s14, 8
      // Predicated region
      $region13: #{tpu_custom_call.1} parent=5 // pred_check
        %p131 = pneg %p130
      $region14: #{tpu_custom_call.1} parent=5 // pred_check_branch
        %133 = sbr.rel (%p131) target = $region16
      $region15: #{tpu_custom_call.1} parent=5 // pred_region
        // Predicated region
        $region17: #{tpu_custom_call.1} parent=15 // pred_check
          %p134 = pneg %p57
        $region18: #{tpu_custom_call.1} parent=15 // pred_check_branch
          %136 = sbr.rel (%p134) target = $region20
        $region19: #{tpu_custom_call.1} parent=15 // pred_region
          %s137 = sand.u32 %s47, 1
          %s138 = scalar_lea.sflag [#allocation6], %s137
          %s139 = sand.u32 %s47, 1
          %s140 = smul.addr %s139, 256
          %s141 = scalar_lea.vmem [#allocation5], %s140
          %s142 = smul.u32 16, %s21
          %s143 = smul.u32 4, %s23
          %s145 = ssub.s32 4096, 4096
          %146 = vsyncadd %s138, %s145
          %s147 = smul.addr %s142, 4
          %s148 = sadd.s32 %s143, %s147
          %s149 = smul.addr %s22, 128
          %s150 = sadd.s32 %s148, %s149
          %s151 = smul.addr %s150, 64
          %s152 = scalar_lea.hbm %s0, %s151
          %s153 = sshll.u32 %s141, 4
          %s154 = int_to_ptr.vmem [resolvable:$true] %s153
          %159 = dma.hbm_to_vmem [thread:$0]  %s152, 4096, %s154, %s138, 256, 256, 16
        $region20: #{tpu_custom_call.1} parent=15 // pred_fallthru
          _
        // Predicated region
        $region21: #{tpu_custom_call.1} parent=15 // pred_check
          %p160 = pneg %p83
        $region22: #{tpu_custom_call.1} parent=15 // pred_check_branch
          %162 = sbr.rel (%p160) target = $region24
        $region23: #{tpu_custom_call.1} parent=15 // pred_region
          %s163 = smul.u32 16, %s21
          %p164 = scmp.lt.s32.totalorder %s163, 31
          %s165 = scalar_select %p164, %s163, 31
          %s166 = smul.addr %s165, 8
          %s167 = scalar_lea.vmem %s1, %s166
          %s168 = smul.u32 16, %s21
        $region24: #{tpu_custom_call.1} parent=15 // pred_fallthru
          _
      $region16: #{tpu_custom_call.1} parent=5 // pred_fallthru
        _
      %p169 = scmp.le.s32.totalorder 1, %s14
      %p170 = scmp.lt.s32.totalorder %s14, 9
      %p171 = pnand %p169, %p170
      %p172 = pneg %p171
      // Predicated region
      $region25: #{tpu_custom_call.1} parent=5 // pred_check
        _
      $region26: #{tpu_custom_call.1} parent=5 // pred_check_branch
        %174 = sbr.rel (%p171) target = $region28
      $region27: #{tpu_custom_call.1} parent=5 // pred_region
        %s175 = ssub.s32 %s14, 1
        %s176 = sand.u32 %s50, 1
        %s177 = scalar_lea.sflag [#allocation6], %s176
        %s178 = sand.u32 %s50, 1
        %s179 = smul.addr %s178, 256
        %s180 = scalar_lea.vmem [#allocation5], %s179
        // Predicated region
        $region29: #{tpu_custom_call.1} parent=27 // pred_check
          %p181 = pneg %p63
        $region30: #{tpu_custom_call.1} parent=27 // pred_check_branch
          %183 = sbr.rel (%p181) target = $region32
        $region31: #{tpu_custom_call.1} parent=27 // pred_region
          %184 = dma.done %s177, 4096
        $region32: #{tpu_custom_call.1} parent=27 // pred_fallthru
          _
        %s185 = sand.u32 %s50, 1
        %s186 = scalar_lea.sflag [#allocation6], %s185
        %s187 = sand.u32 %s50, 1
        %s188 = smul.addr %s187, 256
        %s189 = scalar_lea.vmem [#allocation5], %s188
        %p190 = pneg %p63
        %p191 = pneg %p60
        %s192 = smul.u32 16, %s24
        %p193 = scmp.lt.s32.totalorder %s192, 31
        %s194 = scalar_select %p193, %s192, 31
        %s195 = smul.addr %s194, 8
        %s196 = scalar_lea.vmem %s1, %s195
        %p197 = pneg %p89
        %p198 = pneg %p86
        %p199 = pneg %p115
        %p200 = pneg %p112
        %s201 = sand.u32 %s102, 1
        %s202 = scalar_lea.sflag [#allocation7], %s201
        %s203 = sand.u32 %s102, 1
        %s204 = smul.addr %s203, 8
        %s205 = scalar_lea.vmem [#allocation8], %s204
        %s206 = smul.u32 16, %s24
        %s207 = smul.u32 4, %s26
        %s208 = smul.u32 16, %s24
        %p209 = scmp.lt.s32.totalorder %s208, 31
        %s210 = scalar_select %p209, %s208, 31
        %s211 = smul.addr %s210, 8
        %s212 = scalar_lea.vmem %s1, %s211
        %s213 = smul.u32 16, %s24
        %p214 = scmp.eq.s32.totalorder %s25, 0
        %p215 = scmp.eq.s32.totalorder %s26, 0
        %p216 = pnand %p214, %p215
        %p217 = pneg %p216
        // Predicated region
        $region33: #{tpu_custom_call.1} parent=27 // pred_check
          _
        $region34: #{tpu_custom_call.1} parent=27 // pred_check_branch
          %219 = sbr.rel (%p216) target = $region36
        $region35: #{tpu_custom_call.1} parent=27 // pred_region
          %220 = vst [vmem:[#allocation2] sm:$0xff] -inf
          %221 = vst [vmem:[#allocation2 + $0x8] sm:$0xff] -inf
          %222 = vst [vmem:[#allocation2 + $0x10] sm:$0xff] -inf
          %223 = vst [vmem:[#allocation2 + $0x18] sm:$0xff] -inf
          %224 = vst [vmem:[#allocation2 + $0x20] sm:$0xff] -inf
          %225 = vst [vmem:[#allocation2 + $0x28] sm:$0xff] -inf
          %226 = vst [vmem:[#allocation2 + $0x30] sm:$0xff] -inf
          %227 = vst [vmem:[#allocation2 + $0x38] sm:$0xff] -inf
          %228 = vst [vmem:[#allocation2 + $0x40] sm:$0xff] -inf
          %229 = vst [vmem:[#allocation2 + $0x48] sm:$0xff] -inf
          %230 = vst [vmem:[#allocation2 + $0x50] sm:$0xff] -inf
          %231 = vst [vmem:[#allocation2 + $0x58] sm:$0xff] -inf
          %232 = vst [vmem:[#allocation2 + $0x60] sm:$0xff] -inf
          %233 = vst [vmem:[#allocation2 + $0x68] sm:$0xff] -inf
          %234 = vst [vmem:[#allocation2 + $0x70] sm:$0xff] -inf
          %235 = vst [vmem:[#allocation2 + $0x78] sm:$0xff] -inf
          %236 = vst [vmem:[#allocation3] sm:$0xff] 0.0
          %237 = vst [vmem:[#allocation3 + $0x8] sm:$0xff] 0.0
          %238 = vst [vmem:[#allocation3 + $0x10] sm:$0xff] 0.0
          %239 = vst [vmem:[#allocation3 + $0x18] sm:$0xff] 0.0
          %240 = vst [vmem:[#allocation3 + $0x20] sm:$0xff] 0.0
          %241 = vst [vmem:[#allocation3 + $0x28] sm:$0xff] 0.0
          %242 = vst [vmem:[#allocation3 + $0x30] sm:$0xff] 0.0
          %243 = vst [vmem:[#allocation3 + $0x38] sm:$0xff] 0.0
          %244 = vst [vmem:[#allocation3 + $0x40] sm:$0xff] 0.0
          %245 = vst [vmem:[#allocation3 + $0x48] sm:$0xff] 0.0
          %246 = vst [vmem:[#allocation3 + $0x50] sm:$0xff] 0.0
          %247 = vst [vmem:[#allocation3 + $0x58] sm:$0xff] 0.0
          %248 = vst [vmem:[#allocation3 + $0x60] sm:$0xff] 0.0
          %249 = vst [vmem:[#allocation3 + $0x68] sm:$0xff] 0.0
          %250 = vst [vmem:[#allocation3 + $0x70] sm:$0xff] 0.0
          %251 = vst [vmem:[#allocation3 + $0x78] sm:$0xff] 0.0
          %252 = vst [vmem:[#allocation4] sm:$0xff] 0.0
          %253 = vst [vmem:[#allocation4 + $0x8] sm:$0xff] 0.0
          %254 = vst [vmem:[#allocation4 + $0x10] sm:$0xff] 0.0
          %255 = vst [vmem:[#allocation4 + $0x18] sm:$0xff] 0.0
          %256 = vst [vmem:[#allocation4 + $0x20] sm:$0xff] 0.0
          %257 = vst [vmem:[#allocation4 + $0x28] sm:$0xff] 0.0
          %258 = vst [vmem:[#allocation4 + $0x30] sm:$0xff] 0.0
          %259 = vst [vmem:[#allocation4 + $0x38] sm:$0xff] 0.0
          %260 = vst [vmem:[#allocation4 + $0x40] sm:$0xff] 0.0
          %261 = vst [vmem:[#allocation4 + $0x48] sm:$0xff] 0.0
          %262 = vst [vmem:[#allocation4 + $0x50] sm:$0xff] 0.0
          %263 = vst [vmem:[#allocation4 + $0x58] sm:$0xff] 0.0
          %264 = vst [vmem:[#allocation4 + $0x60] sm:$0xff] 0.0
          %265 = vst [vmem:[#allocation4 + $0x68] sm:$0xff] 0.0
          %266 = vst [vmem:[#allocation4 + $0x70] sm:$0xff] 0.0
          %267 = vst [vmem:[#allocation4 + $0x78] sm:$0xff] 0.0
        $region36: #{tpu_custom_call.1} parent=27 // pred_fallthru
          _
        %s268 = smul.u32 %s25, 512
        %s269 = smul.u32 %s26, 512
        %s270 = sadd.s32 %s268, %s269
        %v271 = vlaneseq
        %v272 = vand.u32 %v271, 127
        loop: start=0, step=1, limit=4
        $region37: #{tpu_custom_call.1} parent=27 // loop_pre_header
          _
        $region38: #{tpu_custom_call.1} parent=27 // loop_header
          %s274 = sphi 0, %s278
          %p275 = scmp.ge.s32.totalorder %s274, 4
        $region39: #{tpu_custom_call.1} parent=27 // loop_header_branch
          %277 = sbr.rel (%p275) target = $region43
        $region40: #{tpu_custom_call.1} parent=27 // loop_body
          %s279 = smul.u32 %s274, 32
          %s280 = scalar_lea.vmem %s212, %s279
          %v281 = vld [vmem:[%s280] sm:$0xff]
          %v282 = vld [vmem:[%s280 + $0x8] sm:$0xff]
          %v283 = vld [vmem:[%s280 + $0x10] sm:$0xff]
          %v284 = vld [vmem:[%s280 + $0x18] sm:$0xff]
          %v285 = vstv %s270
          %v286 = vsub.s32 %v281, %v285
          %v287 = vsub.s32 %v282, %v285
          %v288 = vsub.s32 %v283, %v285
          %v289 = vsub.s32 %v284, %v285
          %290 = vset.pattern.permute.xlu0 0
          %291 = vperm.xlu0 %290, %v286
          %v292 = vpop.permute.xlu0 %291
          %293 = vset.pattern.permute.xlu0 0
          %294 = vperm.xlu0 %293, %v287
          %v295 = vpop.permute.xlu0 %294
          %296 = vset.pattern.permute.xlu0 0
          %297 = vperm.xlu0 %296, %v288
          %v298 = vpop.permute.xlu0 %297
          %299 = vset.pattern.permute.xlu0 0
          %300 = vperm.xlu0 %299, %v289
          %v301 = vpop.permute.xlu0 %300
          %v302 = vsub.s32 %v292, %v272
          %v303 = vsub.s32 %v295, %v272
          %v304 = vsub.s32 %v298, %v272
          %v305 = vsub.s32 %v301, %v272
          %s306 = scalar_lea.vmem [#allocation2], %s279
          %v307 = vld [vmem:[%s306] sm:$0xff]
          %v308 = vld [vmem:[%s306 + $0x8] sm:$0xff]
          %v309 = vld [vmem:[%s306 + $0x10] sm:$0xff]
          %v310 = vld [vmem:[%s306 + $0x18] sm:$0xff]
          %s311 = sshra.s32 %s279, 3
          %s312 = sand.u32 %s279, 7
          %s313 = smul.u32 %s311, 4
          %s314 = smul.addr %s313, 4
          %s315 = scalar_lea.vmem %s180, %s314 [#allocation5]
          %v316 = vld [vmem:[%s315] sm:$0xf]
          %v317 = vld [vmem:[%s315 + $0x10] sm:$0xf]
          %v318 = vld [vmem:[%s315 + $0x20] sm:$0xf]
          %v319 = vld [vmem:[%s315 + $0x30] sm:$0xf]
          %v320 = vld [vmem:[%s315 + $0x4] sm:$0xf]
          %v321 = vld [vmem:[%s315 + $0x14] sm:$0xf]
          %v322 = vld [vmem:[%s315 + $0x24] sm:$0xf]
          %v323 = vld [vmem:[%s315 + $0x34] sm:$0xf]
          %v324 = vmax.bf16 %v316, %v320
          %v325 = vmax.bf16 %v317, %v321
          %v326 = vmax.bf16 %v318, %v322
          %v327 = vmax.bf16 %v319, %v323
          %v328 = vld [vmem:[%s315 + $0x8] sm:$0xf]
          %v329 = vld [vmem:[%s315 + $0x18] sm:$0xf]
          %v330 = vld [vmem:[%s315 + $0x28] sm:$0xf]
          %v331 = vld [vmem:[%s315 + $0x38] sm:$0xf]
          %v332 = vmax.bf16 %v324, %v328
          %v333 = vmax.bf16 %v325, %v329
          %v334 = vmax.bf16 %v326, %v330
          %v335 = vmax.bf16 %v327, %v331
          %v336 = vld [vmem:[%s315 + $0xc] sm:$0xf]
          %v337 = vld [vmem:[%s315 + $0x1c] sm:$0xf]
          %v338 = vld [vmem:[%s315 + $0x2c] sm:$0xf]
          %v339 = vld [vmem:[%s315 + $0x3c] sm:$0xf]
          %v340 = vmax.bf16 %v332, %v336
          %v341 = vmax.bf16 %v333, %v337
          %v342 = vmax.bf16 %v334, %v338
          %v343 = vmax.bf16 %v335, %v339
          %v344 = vunpack.c.l.bf16 %v340
          %v345 = vunpack.c.l.bf16 %v341
          %v346 = vunpack.c.l.bf16 %v342
          %v347 = vunpack.c.l.bf16 %v343
          %v348 = vmax.f32 %v307, %v344
          %v349 = vmax.f32 %v308, %v345
          %v350 = vmax.f32 %v309, %v346
          %v351 = vmax.f32 %v310, %v347
          %vm352 = vcmp.eq.f32.partialorder %v307, %v348
          %vm353 = vcmp.eq.f32.partialorder %v308, %v349
          %vm354 = vcmp.eq.f32.partialorder %v309, %v350
          %vm355 = vcmp.eq.f32.partialorder %v310, %v351
          %v356 = vsub.f32 %v307, %v348
          %v357 = vsub.f32 %v308, %v349
          %v358 = vsub.f32 %v309, %v350
          %v359 = vsub.f32 %v310, %v351
          %v360 = vsel %vm352, 0.0, %v356
          %v361 = vsel %vm353, 0.0, %v357
          %v362 = vsel %vm354, 0.0, %v358
          %v363 = vsel %vm355, 0.0, %v359
          %s364 = scalar_lea.vmem [#allocation3], %s279
          %v365 = vld [vmem:[%s364] sm:$0xff]
          %v366 = vld [vmem:[%s364 + $0x8] sm:$0xff]
          %v367 = vld [vmem:[%s364 + $0x10] sm:$0xff]
          %v368 = vld [vmem:[%s364 + $0x18] sm:$0xff]
          %v369 = vmul.f32 %v360, 1.442695
          %v370 = vpow.pop %v369
          %v371 = vmul.f32 %v361, 1.442695
          %v372 = vpow.pop %v371
          %v373 = vmul.f32 %v362, 1.442695
          %v374 = vpow.pop %v373
          %v375 = vmul.f32 %v363, 1.442695
          %v376 = vpow.pop %v375
          %v377 = vmul.f32 %v365, %v370
          %v378 = vmul.f32 %v366, %v372
          %v379 = vmul.f32 %v367, %v374
          %v380 = vmul.f32 %v368, %v376
          %s381 = scalar_lea.vmem [#allocation4], %s279
          %v382 = vld [vmem:[%s381] sm:$0xff]
          %v383 = vld [vmem:[%s381 + $0x8] sm:$0xff]
          %v384 = vld [vmem:[%s381 + $0x10] sm:$0xff]
          %v385 = vld [vmem:[%s381 + $0x18] sm:$0xff]
          %v386 = vunpack.c.l.bf16 %v316
          %v387 = vunpack.c.l.bf16 %v317
          %v388 = vunpack.c.l.bf16 %v318
          %v389 = vunpack.c.l.bf16 %v319
          %v390 = vsub.f32 %v386, %v348
          %v391 = vsub.f32 %v387, %v349
          %v392 = vsub.f32 %v388, %v350
          %v393 = vsub.f32 %v389, %v351
          %v394 = vmul.f32 %v390, 1.442695
          %v395 = vpow.pop %v394
          %v396 = vmul.f32 %v391, 1.442695
          %v397 = vpow.pop %v396
          %v398 = vmul.f32 %v392, 1.442695
          %v399 = vpow.pop %v398
          %v400 = vmul.f32 %v393, 1.442695
          %v401 = vpow.pop %v400
          %v402 = vadd.f32 %v377, %v395
          %v403 = vadd.f32 %v378, %v397
          %v404 = vadd.f32 %v379, %v399
          %v405 = vadd.f32 %v380, %v401
          %vm406 = vcmp.eq.s32.totalorder %v302, 0
          %vm407 = vcmp.eq.s32.totalorder %v303, 0
          %vm408 = vcmp.eq.s32.totalorder %v304, 0
          %vm409 = vcmp.eq.s32.totalorder %v305, 0
          %v410 = vsel %vm406, %v386, 0.0
          %v411 = vsel %vm407, %v387, 0.0
          %v412 = vsel %vm408, %v388, 0.0
          %v413 = vsel %vm409, %v389, 0.0
          %v414 = vadd.f32 %v382, %v410
          %v415 = vadd.f32 %v383, %v411
          %v416 = vadd.f32 %v384, %v412
          %v417 = vadd.f32 %v385, %v413
          %v418 = vunpack.c.l.bf16 %v320
          %v419 = vunpack.c.l.bf16 %v321
          %v420 = vunpack.c.l.bf16 %v322
          %v421 = vunpack.c.l.bf16 %v323
          %v422 = vsub.f32 %v418, %v348
          %v423 = vsub.f32 %v419, %v349
          %v424 = vsub.f32 %v420, %v350
          %v425 = vsub.f32 %v421, %v351
          %v426 = vmul.f32 %v422, 1.442695
          %v427 = vpow.pop %v426
          %v428 = vmul.f32 %v423, 1.442695
          %v429 = vpow.pop %v428
          %v430 = vmul.f32 %v424, 1.442695
          %v431 = vpow.pop %v430
          %v432 = vmul.f32 %v425, 1.442695
          %v433 = vpow.pop %v432
          %v434 = vadd.f32 %v402, %v427
          %v435 = vadd.f32 %v403, %v429
          %v436 = vadd.f32 %v404, %v431
          %v437 = vadd.f32 %v405, %v433
          %vm438 = vcmp.eq.s32.totalorder %v302, 128
          %vm439 = vcmp.eq.s32.totalorder %v303, 128
          %vm440 = vcmp.eq.s32.totalorder %v304, 128
          %vm441 = vcmp.eq.s32.totalorder %v305, 128
          %v442 = vsel %vm438, %v418, 0.0
          %v443 = vsel %vm439, %v419, 0.0
          %v444 = vsel %vm440, %v420, 0.0
          %v445 = vsel %vm441, %v421, 0.0
          %v446 = vadd.f32 %v414, %v442
          %v447 = vadd.f32 %v415, %v443
          %v448 = vadd.f32 %v416, %v444
          %v449 = vadd.f32 %v417, %v445
          %v450 = vunpack.c.l.bf16 %v328
          %v451 = vunpack.c.l.bf16 %v329
          %v452 = vunpack.c.l.bf16 %v330
          %v453 = vunpack.c.l.bf16 %v331
          %v454 = vsub.f32 %v450, %v348
          %v455 = vsub.f32 %v451, %v349
          %v456 = vsub.f32 %v452, %v350
          %v457 = vsub.f32 %v453, %v351
          %v458 = vmul.f32 %v454, 1.442695
          %v459 = vpow.pop %v458
          %v460 = vmul.f32 %v455, 1.442695
          %v461 = vpow.pop %v460
          %v462 = vmul.f32 %v456, 1.442695
          %v463 = vpow.pop %v462
          %v464 = vmul.f32 %v457, 1.442695
          %v465 = vpow.pop %v464
          %v466 = vadd.f32 %v434, %v459
          %v467 = vadd.f32 %v435, %v461
          %v468 = vadd.f32 %v436, %v463
          %v469 = vadd.f32 %v437, %v465
          %vm470 = vcmp.eq.s32.totalorder %v302, 256
          %vm471 = vcmp.eq.s32.totalorder %v303, 256
          %vm472 = vcmp.eq.s32.totalorder %v304, 256
          %vm473 = vcmp.eq.s32.totalorder %v305, 256
          %v474 = vsel %vm470, %v450, 0.0
          %v475 = vsel %vm471, %v451, 0.0
          %v476 = vsel %vm472, %v452, 0.0
          %v477 = vsel %vm473, %v453, 0.0
          %v478 = vadd.f32 %v446, %v474
          %v479 = vadd.f32 %v447, %v475
          %v480 = vadd.f32 %v448, %v476
          %v481 = vadd.f32 %v449, %v477
          %v482 = vunpack.c.l.bf16 %v336
          %v483 = vunpack.c.l.bf16 %v337
          %v484 = vunpack.c.l.bf16 %v338
          %v485 = vunpack.c.l.bf16 %v339
          %v486 = vsub.f32 %v482, %v348
          %v487 = vsub.f32 %v483, %v349
          %v488 = vsub.f32 %v484, %v350
          %v489 = vsub.f32 %v485, %v351
          %v490 = vmul.f32 %v486, 1.442695
          %v491 = vpow.pop %v490
          %v492 = vmul.f32 %v487, 1.442695
          %v493 = vpow.pop %v492
          %v494 = vmul.f32 %v488, 1.442695
          %v495 = vpow.pop %v494
          %v496 = vmul.f32 %v489, 1.442695
          %v497 = vpow.pop %v496
          %v498 = vadd.f32 %v466, %v491
          %v499 = vadd.f32 %v467, %v493
          %v500 = vadd.f32 %v468, %v495
          %v501 = vadd.f32 %v469, %v497
          %vm502 = vcmp.eq.s32.totalorder %v302, 384
          %vm503 = vcmp.eq.s32.totalorder %v303, 384
          %vm504 = vcmp.eq.s32.totalorder %v304, 384
          %vm505 = vcmp.eq.s32.totalorder %v305, 384
          %v506 = vsel %vm502, %v482, 0.0
          %v507 = vsel %vm503, %v483, 0.0
          %v508 = vsel %vm504, %v484, 0.0
          %v509 = vsel %vm505, %v485, 0.0
          %v510 = vadd.f32 %v478, %v506
          %v511 = vadd.f32 %v479, %v507
          %v512 = vadd.f32 %v480, %v508
          %v513 = vadd.f32 %v481, %v509
          %514 = vst [vmem:[%s306] sm:$0xff] %v348
          %515 = vst [vmem:[%s306 + $0x8] sm:$0xff] %v349
          %516 = vst [vmem:[%s306 + $0x10] sm:$0xff] %v350
          %517 = vst [vmem:[%s306 + $0x18] sm:$0xff] %v351
          %518 = vst [vmem:[%s364] sm:$0xff] %v498
          %519 = vst [vmem:[%s364 + $0x8] sm:$0xff] %v499
          %520 = vst [vmem:[%s364 + $0x10] sm:$0xff] %v500
          %521 = vst [vmem:[%s364 + $0x18] sm:$0xff] %v501
          %522 = vst [vmem:[%s381] sm:$0xff] %v510
          %523 = vst [vmem:[%s381 + $0x8] sm:$0xff] %v511
          %524 = vst [vmem:[%s381 + $0x10] sm:$0xff] %v512
          %525 = vst [vmem:[%s381 + $0x18] sm:$0xff] %v513
        $region41: #{tpu_custom_call.1} parent=27 // loop_footer
          %s278 = sadd.s32 1, %s274
        $region42: #{tpu_custom_call.1} parent=27 // loop_footer_branch
          %273 = sbr.rel target = $region38
        $region43: #{tpu_custom_call.1} parent=27 // loop_exit
          _
        %p526 = scmp.eq.s32.totalorder %s25, 3
        %p527 = pnand %p526, %p215
        %p528 = pneg %p527
        // Predicated region
        $region44: #{tpu_custom_call.1} parent=27 // pred_check
          _
        $region45: #{tpu_custom_call.1} parent=27 // pred_check_branch
          %530 = sbr.rel (%p527) target = $region47
        $region46: #{tpu_custom_call.1} parent=27 // pred_region
          loop: start=0, step=1, limit=4
          $region48: #{tpu_custom_call.1} parent=46 // loop_pre_header
            _
          $region49: #{tpu_custom_call.1} parent=46 // loop_header
            %s532 = sphi 0, %s536
            %p533 = scmp.ge.s32.totalorder %s532, 4
            %s537 = sphi 0.0, %s627
          $region50: #{tpu_custom_call.1} parent=46 // loop_header_branch
            %535 = sbr.rel (%p533) target = $region54
          $region51: #{tpu_custom_call.1} parent=46 // loop_body
            %s538 = smul.u32 %s532, 32
            %s539 = scalar_lea.vmem [#allocation2], %s538
            %v540 = vld [vmem:[%s539] sm:$0xff]
            %v541 = vld [vmem:[%s539 + $0x8] sm:$0xff]
            %v542 = vld [vmem:[%s539 + $0x10] sm:$0xff]
            %v543 = vld [vmem:[%s539 + $0x18] sm:$0xff]
            %544 = vmax.xlane.f32.xlu0 %v540
            %v545 = vpop.xlane.xlu0 %544
            %546 = vmax.xlane.f32.xlu0 %v541
            %v547 = vpop.xlane.xlu0 %546
            %548 = vmax.xlane.f32.xlu0 %v542
            %v549 = vpop.xlane.xlu0 %548
            %550 = vmax.xlane.f32.xlu0 %v543
            %v551 = vpop.xlane.xlu0 %550
            %s552 = scalar_lea.vmem [#allocation3], %s538
            %v553 = vld [vmem:[%s552] sm:$0xff]
            %v554 = vld [vmem:[%s552 + $0x8] sm:$0xff]
            %v555 = vld [vmem:[%s552 + $0x10] sm:$0xff]
            %v556 = vld [vmem:[%s552 + $0x18] sm:$0xff]
            %v557 = vsub.f32 %v540, %v545
            %v558 = vsub.f32 %v541, %v547
            %v559 = vsub.f32 %v542, %v549
            %v560 = vsub.f32 %v543, %v551
            %v561 = vmul.f32 %v557, 1.442695
            %v562 = vpow.pop %v561
            %v563 = vmul.f32 %v558, 1.442695
            %v564 = vpow.pop %v563
            %v565 = vmul.f32 %v559, 1.442695
            %v566 = vpow.pop %v565
            %v567 = vmul.f32 %v560, 1.442695
            %v568 = vpow.pop %v567
            %v569 = vmul.f32 %v553, %v562
            %v570 = vmul.f32 %v554, %v564
            %v571 = vmul.f32 %v555, %v566
            %v572 = vmul.f32 %v556, %v568
            %573 = vadd.xlane.f32.xlu0 %v569
            %v574 = vpop.xlane.xlu0 %573
            %575 = vadd.xlane.f32.xlu0 %v570
            %v576 = vpop.xlane.xlu0 %575
            %577 = vadd.xlane.f32.xlu0 %v571
            %v578 = vpop.xlane.xlu0 %577
            %579 = vadd.xlane.f32.xlu0 %v572
            %v580 = vpop.xlane.xlu0 %579
            %s581 = scalar_lea.vmem [#allocation4], %s538
            %v582 = vld [vmem:[%s581] sm:$0xff]
            %v583 = vld [vmem:[%s581 + $0x8] sm:$0xff]
            %v584 = vld [vmem:[%s581 + $0x10] sm:$0xff]
            %v585 = vld [vmem:[%s581 + $0x18] sm:$0xff]
            %586 = vadd.xlane.f32.xlu0 %v582
            %v587 = vpop.xlane.xlu0 %586
            %588 = vadd.xlane.f32.xlu0 %v583
            %v589 = vpop.xlane.xlu0 %588
            %590 = vadd.xlane.f32.xlu0 %v584
            %v591 = vpop.xlane.xlu0 %590
            %592 = vadd.xlane.f32.xlu0 %v585
            %v593 = vpop.xlane.xlu0 %592
            %v594 = vlog2.pop %v574
            %v595 = vmul.f32 %v594, 0.6931472
            %v596 = vlog2.pop %v576
            %v597 = vmul.f32 %v596, 0.6931472
            %v598 = vlog2.pop %v578
            %v599 = vmul.f32 %v598, 0.6931472
            %v600 = vlog2.pop %v580
            %v601 = vmul.f32 %v600, 0.6931472
            %v602 = vadd.f32 %v545, %v595
            %v603 = vadd.f32 %v547, %v597
            %v604 = vadd.f32 %v549, %v599
            %v605 = vadd.f32 %v551, %v601
            %v606 = vsub.f32 %v602, %v587
            %v607 = vsub.f32 %v603, %v589
            %v608 = vsub.f32 %v604, %v591
            %v609 = vsub.f32 %v605, %v593
            %vm610 = vcmask 7168
            %v611 = vsel %vm610, %v606, 0.0
            %v612 = vsel %vm610, %v607, 0.0
            %v613 = vadd.f32 %v611, %v612
            %v614 = vsel %vm610, %v608, 0.0
            %v615 = vadd.f32 %v613, %v614
            %v616 = vsel %vm610, %v609, 0.0
            %v617 = vadd.f32 %v615, %v616
            %618 = vadd.xlane.f32.xlu0 %v617
            %v619 = vpop.xlane.xlu0 %618
            %v620 = vrot.slane %v619, 4
            %v621 = vadd.f32 %v619, %v620
            %v622 = vrot.slane %v621, 2
            %v623 = vadd.f32 %v621, %v622
            %v624 = vrot.slane %v623, 1
            %v625 = vadd.f32 %v623, %v624
            %s626 = vtos %v625
            %s627 = sadd.f32 %s537, %s626
          $region52: #{tpu_custom_call.1} parent=46 // loop_footer
            %s536 = sadd.s32 1, %s532
          $region53: #{tpu_custom_call.1} parent=46 // loop_footer_branch
            %531 = sbr.rel target = $region49
          $region54: #{tpu_custom_call.1} parent=46 // loop_exit
            _
          %v628 = vstv %s537
          %629 = vst [vmem:[%s205] sm:$0xff] %v628
        $region47: #{tpu_custom_call.1} parent=27 // pred_fallthru
          _
        %s630 = sand.u32 %s102, 1
        %s631 = scalar_lea.sflag [#allocation7], %s630
        %s632 = sand.u32 %s102, 1
        %s633 = smul.addr %s632, 8
        %s634 = scalar_lea.vmem [#allocation8], %s633
        // Predicated region
        $region55: #{tpu_custom_call.1} parent=27 // pred_check
          %p635 = pneg %p112
        $region56: #{tpu_custom_call.1} parent=27 // pred_check_branch
          %637 = sbr.rel (%p635) target = $region58
        $region57: #{tpu_custom_call.1} parent=27 // pred_region
          %s639 = ssub.s32 128, 128
          %640 = vsyncadd %s631, %s639
          %s641 = smul.addr %s24, 128
          %s642 = scalar_lea.hbm %s2, %s641
          %s644 = sshll.u32 %s634, 4
          %s645 = int_to_ptr.vmem [resolvable:$true] %s644
          %647 = dma.vmem_to_hbm [thread:$0]  %s645, 128, %s642, %s631
        $region58: #{tpu_custom_call.1} parent=27 // pred_fallthru
          _
      $region28: #{tpu_custom_call.1} parent=5 // pred_fallthru
        _
      %p648 = scmp.le.s32.totalorder 2, %s14
      // Predicated region
      $region59: #{tpu_custom_call.1} parent=5 // pred_check
        %p649 = pneg %p648
      $region60: #{tpu_custom_call.1} parent=5 // pred_check_branch
        %651 = sbr.rel (%p649) target = $region62
      $region61: #{tpu_custom_call.1} parent=5 // pred_region
        %s652 = ssub.s32 %s14, 2
        // Predicated region
        $region63: #{tpu_custom_call.1} parent=61 // pred_check
          %p653 = pneg %p118
        $region64: #{tpu_custom_call.1} parent=61 // pred_check_branch
          %655 = sbr.rel (%p653) target = $region66
        $region65: #{tpu_custom_call.1} parent=61 // pred_region
          %s656 = sand.u32 %s103, 1
          %s657 = scalar_lea.sflag [#allocation7], %s656
          %s658 = sand.u32 %s103, 1
          %s659 = smul.addr %s658, 8
          %s660 = scalar_lea.vmem [#allocation8], %s659
          %661 = dma.done %s657, 128
        $region66: #{tpu_custom_call.1} parent=61 // pred_fallthru
          _
      $region62: #{tpu_custom_call.1} parent=5 // pred_fallthru
        _
    $region6: #{tpu_custom_call.1} parent=1 // loop_footer
      %s18 = sadd.s32 1, %s14
    $region7: #{tpu_custom_call.1} parent=1 // loop_footer_branch
      %13 = sbr.rel target = $region3
    $region8: #{tpu_custom_call.1} parent=1 // loop_exit
      _
    %662 = vsyncpa [#allocation6], 1
    %s663 = scalar_lea.sflag [#allocation6], 1
    %664 = vsyncpa %s663, 1
    %665 = vsyncpa [#allocation7], 1
    %s666 = scalar_lea.sflag [#allocation7], 1
    %667 = vsyncpa %s666, 1

</llo_original>
